<compile_context>
chip_gen: v7x
topology: tpu7x:2x2x1
jax: 0.10.0
libtpu: 0.0.40
codegen_flags: <defaults>
</compile_context>

<pallas_src>
import functools

import jax
import jax.numpy as jnp
from jax.experimental import pallas as pl
from jax.experimental.pallas import tpu as pltpu


def _label_smoothing_kernel(pred_ref, tgt_ref, out_ref, *,
                            smoothing, confidence, classes, n_true, tile_n):
    # pred_ref: (TILE_N, C) input dtype (block spans the FULL class axis, C == classes)
    # tgt_ref : (TILE_N, 1) int32
    # out_ref : (1, 1, 128) f32 per-tile partial-sum block (lane-dense, parallel grid)
    i = pl.program_id(0)

    logits = pred_ref[...].astype(jnp.float32)          # f32 math in-register (v5e-safe)
    tgt = tgt_ref[...]                                  # (TILE_N, 1) int32
    tn, c = logits.shape                                # c == classes

    # log-softmax statistics; all reductions stay 2-D (keepdims).
    m = jnp.max(logits, axis=-1, keepdims=True)                        # (TILE_N, 1)
    shifted = logits - m                                               # (TILE_N, C)
    lse = jnp.log(jnp.sum(jnp.exp(shifted), axis=-1, keepdims=True))   # (TILE_N, 1)

    # Folded smoothed cross-entropy, logp never materialized:
    #   sum_c logp   = sum_c shifted - C * lse
    #   logp[target] = shifted[target] - lse
    #   loss_row = -smooth * sum_c logp - (confidence - smooth) * logp[target]
    col = jax.lax.broadcasted_iota(jnp.int32, (tn, c), 1)
    is_target = col == tgt                                             # (TILE_N, C) bool
    sum_shifted = jnp.sum(shifted, axis=-1, keepdims=True)             # (TILE_N, 1)
    tgt_shifted = jnp.sum(jnp.where(is_target, shifted, jnp.float32(0.0)),
                          axis=-1, keepdims=True)                      # (TILE_N, 1)
    sum_logp = sum_shifted - jnp.float32(classes) * lse
    tgt_logp = tgt_shifted - lse

    smooth_val = smoothing / (classes - 1)
    per_row = (-jnp.float32(smooth_val) * sum_logp
               - jnp.float32(confidence - smooth_val) * tgt_logp)      # (TILE_N, 1)

    # Mask rows past the true batch size (last tile may hold padded/garbage rows;
    # select drops the discarded branch without propagating NaN/Inf).
    row = i * tile_n + jax.lax.broadcasted_iota(jnp.int32, (tn, 1), 0)
    per_row = jnp.where(row < n_true, per_row, jnp.float32(0.0))

    partial = jnp.sum(per_row, keepdims=True)                          # (1, 1)
    out_ref[...] = jnp.broadcast_to(partial, (1, 1, 128))


def _vmem_capacity_bytes():
    """Physical VMEM per TensorCore; conservative fallback if the query fails."""
    try:
        info = pltpu.get_tpu_info()
        cap = getattr(info, "vmem_capacity_bytes", None)
        if cap:
            return int(cap)
    except Exception:
        pass
    return 64 << 20   # assume the smallest generation (v7x: 64 MiB) if unknown


def _pick_tile_n(n, c, dtype, budget_bytes):
    """Largest row tile (multiple of 8 for f32 / 16 for sub-32-bit) whose real
    per-step VMEM footprint fits the generation-aware budget.

    Per row of the tile we count:
      * double-buffered pred block          : 2 * C * itemsize
      * live f32 intermediates (cast/shifted/exp), ~2.5 copies : 10 * C
      * (TILE_N, 1) int32 target block, lane-padded to 128, double-buffered : 1024 B
    """
    itemsize = jnp.dtype(dtype).itemsize
    row_align = 16 if itemsize < 4 else 8
    per_row = c * (2 * itemsize + 10) + 1024
    usable = max(budget_bytes - (2 << 20), per_row)      # headroom for internal scratch
    max_rows = max(row_align, usable // per_row)
    n_pad = pl.cdiv(n, row_align) * row_align
    tile = min(max_rows, n_pad)
    return max(row_align, (tile // row_align) * row_align)


def label_smoothing_loss(pred, target, *, classes, smoothing=0.1, tile_n=None):
    """pred: (N, classes) logits (f32 or bf16), target: (N,) int labels -> scalar f32 loss."""
    assert pred.ndim == 2 and pred.shape[1] == classes
    assert classes >= 2, "LabelSmoothingLoss needs classes >= 2 (smoothing/(classes-1))"
    n, c = pred.shape
    confidence = 1.0 - smoothing
    tgt2d = target.astype(jnp.int32).reshape(n, 1)

    cap = _vmem_capacity_bytes()
    if tile_n is None:
        # ~70% of physical VMEM for the streaming working set (48 MiB-class on v7x,
        # ~90 MiB on v5e/v6e where larger row tiles amortize per-step overhead).
        tile_n = _pick_tile_n(n, c, pred.dtype, int(cap * 0.70))
    num_tiles = pl.cdiv(n, tile_n)

    kernel = functools.partial(
        _label_smoothing_kernel,
        smoothing=smoothing, confidence=confidence,
        classes=classes, n_true=n, tile_n=tile_n)

    itemsize = jnp.dtype(pred.dtype).itemsize
    cost = pl.CostEstimate(
        flops=7 * n * c,                        # shift, exp-sum, folded reductions, select
        transcendentals=n * c + n,              # exp per element + log per row
        bytes_accessed=n * c * itemsize + n * 4 + num_tiles * 128 * 4)

    vmem_limit = max(32 << 20, int(cap * 0.80))   # explicit limit (v5e default is 16 MiB)

    partials = pl.pallas_call(
        kernel,
        out_shape=jax.ShapeDtypeStruct((num_tiles, 1, 128), jnp.float32),
        grid=(num_tiles,),
        in_specs=[
            pl.BlockSpec((tile_n, c), lambda i: (i, 0)),   # row tile, full class axis
            pl.BlockSpec((tile_n, 1), lambda i: (i, 0)),   # matching row tile of targets
        ],
        out_specs=pl.BlockSpec((1, 1, 128), lambda i: (i, 0, 0)),
        compiler_params=pltpu.CompilerParams(
            dimension_semantics=("parallel",),             # independent tiles -> both v7x TCs
            vmem_limit_bytes=vmem_limit),
        cost_estimate=cost,
    )(pred, tgt2d)

    # Tiny finalization in plain JAX: tree-sum of per-tile partials, mean over true N.
    return jnp.sum(partials[:, 0, 0]) / jnp.float32(n)


def _ref_loss(pred, target, classes, smoothing):
    """Pure-JAX reference with the same math as the PyTorch module."""
    logp = jax.nn.log_softmax(pred.astype(jnp.float32), axis=-1)
    n = pred.shape[0]
    true_dist = jnp.full((n, classes), smoothing / (classes - 1), jnp.float32)
    true_dist = true_dist.at[jnp.arange(n), target].set(1.0 - smoothing)
    return jnp.mean(jnp.sum(-true_dist * logp, axis=-1))


if __name__ == "__main__":
    key = jax.random.PRNGKey(0)

    # (N, C, dtype, forced tile_n)
    cases = [
        (8, 32, jnp.float32, None),     # single tile, exact fit
        (10, 48, jnp.float32, None),    # padded tile -> row-mask path
        (24, 32, jnp.float32, 8),       # multi-tile parallel grid -> per-tile partials
        (30, 33, jnp.float32, 8),       # odd C (full-dim class block) + padded last tile
        (16, 32, jnp.bfloat16, None),   # bf16 streamed through VMEM, f32 math in-kernel
    ]

    for idx, (n, c, dtype, forced_tile) in enumerate(cases):
        k1, k2 = jax.random.split(jax.random.fold_in(key, idx))
        pred = jax.random.normal(k1, (n, c), dtype=jnp.float32).astype(dtype)
        target = jax.random.randint(k2, (n,), 0, c, dtype=jnp.int32)

        loss = label_smoothing_loss(pred, target, classes=c, smoothing=0.1,
                                    tile_n=forced_tile)
        jax.block_until_ready(loss)

        ref = _ref_loss(pred, target, c, 0.1)
        assert jnp.allclose(loss, ref, atol=1e-4, rtol=1e-4), (idx, float(loss), float(ref))

    print("KERNEL_OK")
</pallas_src>

<mosaic_0001>
module attributes {stable_mosaic.version = 11 : i64} {
  func.func @_label_smoothing_kernel(%arg0: i32, %arg1: memref<8x32xf32, #tpu.memory_space<vmem>>, %arg2: memref<8x1xi32, #tpu.memory_space<vmem>>, %arg3: memref<1x1x128xf32, #tpu.memory_space<vmem>>) attributes {dimension_semantics = [#tpu.dimension_semantics<parallel>], iteration_bounds = array<i64: 1>, scalar_prefetch = 0 : i64, scratch_operands = 0 : i64, tpu.core_type = #tpu.core_type<tc>, window_params = [{transform_indices = @transform_0, window_bounds = array<i64: 8, 32>}, {transform_indices = @transform_1, window_bounds = array<i64: 8, 1>}, {transform_indices = @transform_2, window_bounds = array<i64: 1, 1, 128>}]} {
    %c0 = arith.constant 0 : index
    %c0_0 = arith.constant 0 : index
    %0 = vector.load %arg1[%c0, %c0_0] : memref<8x32xf32, #tpu.memory_space<vmem>>, vector<8x32xf32>
    %c0_1 = arith.constant 0 : index
    %c0_2 = arith.constant 0 : index
    %1 = vector.load %arg2[%c0_1, %c0_2] : memref<8x1xi32, #tpu.memory_space<vmem>>, vector<8x1xi32>
    %cst = arith.constant dense<0xFF800000> : vector<8xf32>
    %2 = vector.multi_reduction <maximumf>, %0, %cst [1] : vector<8x32xf32> to vector<8xf32>
    %3 = vector.shape_cast %2 : vector<8xf32> to vector<8x1xf32>
    %4 = vector.broadcast %3 : vector<8x1xf32> to vector<8x32xf32>
    %5 = arith.subf %0, %4 : vector<8x32xf32>
    %6 = math.exp %5 : vector<8x32xf32>
    %cst_3 = arith.constant dense<0.000000e+00> : vector<8xf32>
    %7 = vector.multi_reduction <add>, %6, %cst_3 [1] : vector<8x32xf32> to vector<8xf32>
    %8 = vector.shape_cast %7 : vector<8xf32> to vector<8x1xf32>
    %9 = math.log %8 : vector<8x1xf32>
    %10 = tpu.iota {dimensions = array<i32: 1>} : vector<8x32xi32>
    %11 = vector.broadcast %1 : vector<8x1xi32> to vector<8x32xi32>
    %12 = arith.cmpi eq, %10, %11 : vector<8x32xi32>
    %cst_4 = arith.constant dense<0.000000e+00> : vector<8xf32>
    %13 = vector.multi_reduction <add>, %5, %cst_4 [1] : vector<8x32xf32> to vector<8xf32>
    %14 = vector.shape_cast %13 : vector<8xf32> to vector<8x1xf32>
    %cst_5 = arith.constant 0.000000e+00 : f32
    %15 = vector.broadcast %cst_5 : f32 to vector<8x32xf32>
    %16 = arith.select %12, %5, %15 : vector<8x32xi1>, vector<8x32xf32>
    %cst_6 = arith.constant dense<0.000000e+00> : vector<8xf32>
    %17 = vector.multi_reduction <add>, %16, %cst_6 [1] : vector<8x32xf32> to vector<8xf32>
    %18 = vector.shape_cast %17 : vector<8xf32> to vector<8x1xf32>
    %cst_7 = arith.constant 3.200000e+01 : f32
    %19 = vector.broadcast %cst_7 : f32 to vector<8x1xf32>
    %20 = arith.mulf %19, %9 : vector<8x1xf32>
    %21 = arith.subf %14, %20 : vector<8x1xf32>
    %22 = arith.subf %18, %9 : vector<8x1xf32>
    %cst_8 = arith.constant 0.000000e+00 : f32
    %cst_9 = arith.constant 0.0032258064 : f32
    %23 = arith.subf %cst_8, %cst_9 : f32
    %24 = vector.broadcast %23 : f32 to vector<8x1xf32>
    %25 = arith.mulf %24, %21 : vector<8x1xf32>
    %cst_10 = arith.constant 0.896774172 : f32
    %26 = vector.broadcast %cst_10 : f32 to vector<8x1xf32>
    %27 = arith.mulf %26, %22 : vector<8x1xf32>
    %28 = arith.subf %25, %27 : vector<8x1xf32>
    %c8_i32 = arith.constant 8 : i32
    %29 = arith.muli %arg0, %c8_i32 : i32
    %30 = tpu.iota {dimensions = array<i32: 0>} : vector<8x1xi32>
    %31 = vector.broadcast %29 : i32 to vector<8x1xi32>
    %32 = arith.addi %31, %30 : vector<8x1xi32>
    %c8_i32_11 = arith.constant 8 : i32
    %33 = vector.broadcast %c8_i32_11 : i32 to vector<8x1xi32>
    %34 = arith.cmpi slt, %32, %33 : vector<8x1xi32>
    %cst_12 = arith.constant 0.000000e+00 : f32
    %35 = vector.broadcast %cst_12 : f32 to vector<8x1xf32>
    %36 = arith.select %34, %28, %35 : vector<8x1xi1>, vector<8x1xf32>
    %37 = vector.shape_cast %36 : vector<8x1xf32> to vector<1x8x1xf32>
    %cst_13 = arith.constant dense<0.000000e+00> : vector<1xf32>
    %38 = vector.multi_reduction <add>, %37, %cst_13 [1, 2] : vector<1x8x1xf32> to vector<1xf32>
    %39 = vector.shape_cast %38 : vector<1xf32> to vector<1x1x1xf32>
    %40 = vector.extract %39[0, 0, 0] : f32 from vector<1x1x1xf32>
    %41 = vector.broadcast %40 : f32 to vector<1x1xf32>
    %42 = vector.shape_cast %41 : vector<1x1xf32> to vector<1x1x1xf32>
    %43 = vector.broadcast %42 : vector<1x1x1xf32> to vector<1x1x128xf32>
    %c0_14 = arith.constant 0 : index
    %c0_15 = arith.constant 0 : index
    %c0_16 = arith.constant 0 : index
    %44 = vector.load %arg3[%c0_14, %c0_15, %c0_16] : memref<1x1x128xf32, #tpu.memory_space<vmem>>, vector<1x1x128xf32>
    tpu.vector_store %arg3[%c0_14, %c0_15, %c0_16], %43 {strides = array<i32>} : memref<1x1x128xf32, #tpu.memory_space<vmem>>, vector<1x1x128xf32>,
    return
  }
  func.func @transform_0(%arg0: i32) -> (i32, i32) {
    %c0_i32 = arith.constant 0 : i32
    %c0_i32_0 = arith.constant 0 : i32
    return %arg0, %c0_i32 : i32, i32
  }
  func.func @transform_1(%arg0: i32) -> (i32, i32) {
    %c0_i32 = arith.constant 0 : i32
    %c0_i32_0 = arith.constant 0 : i32
    return %arg0, %c0_i32 : i32, i32
  }
  func.func @transform_2(%arg0: i32) -> (i32, i32, i32) {
    %c0_i32 = arith.constant 0 : i32
    %c0_i32_0 = arith.constant 0 : i32
    %c0_i32_1 = arith.constant 0 : i32
    return %arg0, %c0_i32, %c0_i32_0 : i32, i32, i32
  }
}

</mosaic_0001>

<llo_original>
// kernel: tpu_custom_call.1
$region0: #{tpu_custom_call.1}
  #allocation0 [shape = 'u32[]', space=smem, size = 0x4, offset = 0x4, fixed_abs, tag = 'smem constant byte address 0x4 - core index']
  #allocation1 [shape = 'u32[144,128]{1,0:T(1,128)}', space=vmem, size = 0x12000, scoped, tag = 'internal scratch']
  %s0 = inlined_call_operand.vmem [shape: f32[8,32], index: 0, kind: input, shape index: {}]
  %s1 = inlined_call_operand.vmem [shape: s32[8,1], index: 1, kind: input, shape index: {}]
  %s2 = inlined_call_operand.hbm [shape: f32[1,1,128], index: 2, kind: output, shape index: {}]
  %s3 = sld [smem:[#allocation0]]
  $region18: #{tpu_custom_call.1} parent=0
    _
  %s5 = ssub.s32 1, %s3
  %s6 = scalar_select 0, %s5, %s3
  $region1: #{tpu_custom_call.1} parent=0
    #allocation2 [shape = 'u8[512]{0}', space=vmem, size = 0x400, scoped, tag = 'output window, operand 0, single buffered']
    #allocation3 [shape = 's32[1]{0}', space=sflag, size = 0x4, scoped, tag = 'scoped memory for tpu_custom_call.1']
    %7 = vsyncpa [#allocation3], 0
    // Predicated region
    $region2: #{tpu_custom_call.1} parent=1 // pred_check
      _
    $region3: #{tpu_custom_call.1} parent=1 // pred_check_branch
      %9 = sbr.rel (0) target = $region5
    $region4: #{tpu_custom_call.1} parent=1 // pred_region
      _
    $region5: #{tpu_custom_call.1} parent=1 // pred_fallthru
      _
    // Predicated region
    $region6: #{tpu_custom_call.1} parent=1 // pred_check
      _
    $region7: #{tpu_custom_call.1} parent=1 // pred_check_branch
      %11 = sbr.rel (0) target = $region9
    $region8: #{tpu_custom_call.1} parent=1 // pred_region
      _
    $region9: #{tpu_custom_call.1} parent=1 // pred_fallthru
      _
    %v12 = vld [vmem:[%s0] sm:$0xff]
    %v13 = vld [vmem:[%s1] sm:$0xff]
    %vm14 = vcmask 261120
    %v15 = vsel %vm14, %v12, -inf
    %16 = vmax.xlane.f32.xlu0 %v15
    %v17 = vpop.xlane.xlu0 %16
    %v18 = vsub.f32 %v12, %v17
    %v19 = vmul.f32 %v18, 1.442695
    %v20 = vpow.pop %v19
    %v21 = vsel %vm14, %v20, 0.0
    %22 = vadd.xlane.f32.xlu0 %v21
    %v23 = vpop.xlane.xlu0 %22
    %v24 = vlog2.pop %v23
    %v25 = vmul.f32 %v24, 0.6931472
    %v26 = vlaneseq
    %v27 = vand.u32 %v26, 127
    %28 = vset.pattern.permute.xlu0 0
    %29 = vperm.xlu0 %28, %v13
    %v30 = vpop.permute.xlu0 %29
    %vm31 = vcmp.eq.s32.totalorder %v27, %v30
    %v32 = vsel %vm14, %v18, 0.0
    %33 = vadd.xlane.f32.xlu0 %v32
    %v34 = vpop.xlane.xlu0 %33
    %v35 = vsel %vm31, %v18, 0.0
    %v36 = vsel %vm14, %v35, 0.0
    %37 = vadd.xlane.f32.xlu0 %v36
    %v38 = vpop.xlane.xlu0 %37
    %v39 = vmul.f32 %v25, 32.0
    %v40 = vsub.f32 %v34, %v39
    %v41 = vsub.f32 %v38, %v25
    %v42 = vmul.f32 %v40, -0.0032258064
    %v43 = vmul.f32 %v41, 0.8967742
    %v44 = vsub.f32 %v42, %v43
    %s45 = smul.u32 0, 8
    %v46 = vlaneseq
    %v47 = vshrl.u32 %v46, 7
    %v48 = vstv %s45
    %v49 = vadd.s32 %v48, %v47
    %vm50 = vcmp.lt.s32.totalorder %v49, 8
    %v51 = vsel %vm50, %v44, 0.0
    %vm52 = vcmask 7168
    %v53 = vsel %vm52, %v51, 0.0
    %54 = vadd.xlane.f32.xlu0 %v53
    %v55 = vpop.xlane.xlu0 %54
    %v56 = vrot.slane %v55, 4
    %v57 = vadd.f32 %v55, %v56
    %v58 = vrot.slane %v57, 2
    %v59 = vadd.f32 %v57, %v58
    %v60 = vrot.slane %v59, 1
    %v61 = vadd.f32 %v59, %v60
    %s62 = vtos %v61
    %v63 = vstv %s62
    %64 = vst [vmem:[#allocation2] sm:$0x1] %v63
    // Predicated region
    $region10: #{tpu_custom_call.1} parent=1 // pred_check
      _
    $region11: #{tpu_custom_call.1} parent=1 // pred_check_branch
      %66 = sbr.rel (0) target = $region13
    $region12: #{tpu_custom_call.1} parent=1 // pred_region
      %s68 = ssub.s32 16, 16
      %69 = vsyncadd [#allocation3], %s68
      %s71 = sshll.u32 [#allocation2], 4
      %s72 = int_to_ptr.vmem [resolvable:$true] %s71
      %74 = dma.vmem_to_hbm [thread:$0]  %s72, 16, %s2, [#allocation3]
    $region13: #{tpu_custom_call.1} parent=1 // pred_fallthru
      _
    // Predicated region
    $region14: #{tpu_custom_call.1} parent=1 // pred_check
      _
    $region15: #{tpu_custom_call.1} parent=1 // pred_check_branch
      %76 = sbr.rel (0) target = $region17
    $region16: #{tpu_custom_call.1} parent=1 // pred_region
      %77 = dma.done [#allocation3], 16
    $region17: #{tpu_custom_call.1} parent=1 // pred_fallthru
      _
    %78 = vsyncpa [#allocation3], 1

</llo_original>
